<compile_context>
chip_gen: v6e
topology: v6e:2x2x1
jax: 0.10.0
libtpu: 0.0.40
codegen_flags: <defaults>
</compile_context>

<pallas_src>
import functools

import jax
import jax.numpy as jnp
from jax import lax
from jax.experimental import pallas as pl
from jax.experimental.pallas import tpu as pltpu


_VMEM_LIMIT = 48 * 1024 * 1024        # > 32 MiB default scoped, < v7x 64 MiB physical


def _round_up(x, m):
    return ((x + m - 1) // m) * m


# ----------------------------------------------------------------------------
# Weight packing: PyTorch gate layout [i|f|g|o] along 4H, padded per-gate so
# each gate occupies a lane-aligned Hp = round_up(H, 128) block.  Zero padding
# keeps padded hidden units exactly zero through the whole recurrence.
# ----------------------------------------------------------------------------
def _pack_gate_weight(w, H, Hp, in_pad):
    """w: (4H, in_dim) PyTorch layout -> (in_pad, 4*Hp) ready for x @ W."""
    in_dim = w.shape[1]
    w4 = w.reshape(4, H, in_dim)
    w4 = jnp.pad(w4, ((0, 0), (0, Hp - H), (0, in_pad - in_dim)))
    return jnp.transpose(w4, (2, 0, 1)).reshape(in_pad, 4 * Hp)


def _pack_gate_bias(b, H, Hp):
    b4 = jnp.pad(b.reshape(4, H), ((0, 0), (0, Hp - H)))
    return b4.reshape(1, 4 * Hp).astype(jnp.float32)


# ----------------------------------------------------------------------------
# Hoisted input projections.  Outputs are bf16 pre-gates WITHOUT bias (bias is
# added in f32 inside the LSTM kernel).
# ----------------------------------------------------------------------------
def _in_proj1_kernel(x_ref, wf_ref, wb_ref, pgf_ref, pgb_ref):
    x = x_ref[...]
    pgf_ref[...] = jnp.dot(x, wf_ref[...],
                           preferred_element_type=jnp.float32).astype(pgf_ref.dtype)
    pgb_ref[...] = jnp.dot(x, wb_ref[...],
                           preferred_element_type=jnp.float32).astype(pgb_ref.dtype)


def _in_proj2_kernel(yf_ref, yb_ref, wff_ref, wfb_ref, wbf_ref, wbb_ref,
                     pgf_ref, pgb_ref):
    yf = yf_ref[...]
    yb = yb_ref[...]
    pgf_ref[...] = (jnp.dot(yf, wff_ref[...], preferred_element_type=jnp.float32)
                    + jnp.dot(yb, wfb_ref[...], preferred_element_type=jnp.float32)
                    ).astype(pgf_ref.dtype)
    pgb_ref[...] = (jnp.dot(yf, wbf_ref[...], preferred_element_type=jnp.float32)
                    + jnp.dot(yb, wbb_ref[...], preferred_element_type=jnp.float32)
                    ).astype(pgb_ref.dtype)


def _input_proj1(x2, wf, wb, *, row_block):
    """x2: (R, D) bf16 -> bf16 pre-gates (R, 4Hp) for fwd and bwd directions."""
    R, D = x2.shape
    Gp = wf.shape[1]
    row = lambda r: (r, 0)
    const = lambda r: (0, 0)
    return pl.pallas_call(
        _in_proj1_kernel,
        out_shape=(jax.ShapeDtypeStruct((R, Gp), jnp.bfloat16),
                   jax.ShapeDtypeStruct((R, Gp), jnp.bfloat16)),
        grid_spec=pltpu.PrefetchScalarGridSpec(
            num_scalar_prefetch=0,
            grid=(R // row_block,),
            in_specs=[
                pl.BlockSpec((row_block, D), row),
                pl.BlockSpec((D, Gp), const),
                pl.BlockSpec((D, Gp), const),
            ],
            out_specs=(pl.BlockSpec((row_block, Gp), row),
                       pl.BlockSpec((row_block, Gp), row)),
        ),
        compiler_params=pltpu.CompilerParams(
            dimension_semantics=("parallel",),
            vmem_limit_bytes=_VMEM_LIMIT),
    )(x2, wf, wb)


def _input_proj2(yf2, yb2, wff, wfb, wbf, wbb, *, row_block):
    """Two-source projection (fwd-half / bwd-half of the layer input)."""
    R, D = yf2.shape
    Gp = wff.shape[1]
    row = lambda r: (r, 0)
    const = lambda r: (0, 0)
    return pl.pallas_call(
        _in_proj2_kernel,
        out_shape=(jax.ShapeDtypeStruct((R, Gp), jnp.bfloat16),
                   jax.ShapeDtypeStruct((R, Gp), jnp.bfloat16)),
        grid_spec=pltpu.PrefetchScalarGridSpec(
            num_scalar_prefetch=0,
            grid=(R // row_block,),
            in_specs=[
                pl.BlockSpec((row_block, D), row),
                pl.BlockSpec((row_block, D), row),
                pl.BlockSpec((D, Gp), const),
                pl.BlockSpec((D, Gp), const),
                pl.BlockSpec((D, Gp), const),
                pl.BlockSpec((D, Gp), const),
            ],
            out_specs=(pl.BlockSpec((row_block, Gp), row),
                       pl.BlockSpec((row_block, Gp), row)),
        ),
        compiler_params=pltpu.CompilerParams(
            dimension_semantics=("parallel",),
            vmem_limit_bytes=_VMEM_LIMIT),
    )(yf2, yb2, wff, wfb, wbf, wbb)


# ----------------------------------------------------------------------------
# Fused bidirectional LSTM layer. Grid = (batch blocks [parallel], time blocks
# [arbitrary/serial]).  h/c state is carried in vregs inside the unrolled inner
# loop and persisted across time grid steps in VMEM scratch.  The last layer
# additionally fuses the FC + sigmoid head on its final time step.
# ----------------------------------------------------------------------------
def _bilstm_kernel(len_ref, pgf_ref, pgb_ref, whh_ref, bf_ref, bb_ref, *rest,
                   t_block, hidden_pad, seq_pad, with_head, unroll):
    if with_head:
        (fcwf_ref, fcwb_ref, fcb_ref,
         out_ref, hf_scr, hb_scr, cf_scr, cb_scr) = rest
    else:
        (yf_ref, yb_ref, hf_scr, hb_scr, cf_scr, cb_scr) = rest

    tb = pl.program_id(1)
    n_tb = pl.num_programs(1)
    Hp = hidden_pad
    G = 4 * Hp

    @pl.when(tb == 0)
    def _():
        hf_scr[...] = jnp.zeros_like(hf_scr)
        hb_scr[...] = jnp.zeros_like(hb_scr)
        cf_scr[...] = jnp.zeros_like(cf_scr)
        cb_scr[...] = jnp.zeros_like(cb_scr)

    lengths = len_ref[...]          # (batch_block, Hp) int32, resident
    bias_f = bf_ref[...]            # (1, 4Hp) f32
    bias_b = bb_ref[...]

    def gate_math(gates, c):
        i_g = jax.nn.sigmoid(gates[:, 0 * Hp:1 * Hp])
        f_g = jax.nn.sigmoid(gates[:, 1 * Hp:2 * Hp])
        g_g = jnp.tanh(gates[:, 2 * Hp:3 * Hp])
        o_g = jax.nn.sigmoid(gates[:, 3 * Hp:4 * Hp])
        c_new = f_g * c + i_g * g_g
        h_new = o_g * jnp.tanh(c_new)
        return h_new, c_new

    def step(j, carry):
        hf, cf, hb, cb = carry
        t = tb * t_block + j                       # fwd original time
        jr = t_block - 1 - j
        t_rev = seq_pad - 1 - t                    # bwd original time (descending)

        # One MXU matmul per step for BOTH directions: [hf|hb] @ blockdiag(Whh).
        h_cat = jnp.concatenate([hf, hb], axis=-1).astype(whh_ref.dtype)
        g_both = jnp.dot(h_cat, whh_ref[...], preferred_element_type=jnp.float32)

        gf = pgf_ref[j].astype(jnp.float32) + bias_f + g_both[:, :G]
        gb = pgb_ref[jr].astype(jnp.float32) + bias_b + g_both[:, G:]

        hf_n, cf_n = gate_math(gf, cf)
        hb_n, cb_n = gate_math(gb, cb)

        mf = lengths > t
        mb = lengths > t_rev
        hf = jnp.where(mf, hf_n, hf)
        cf = jnp.where(mf, cf_n, cf)
        hb = jnp.where(mb, hb_n, hb)
        cb = jnp.where(mb, cb_n, cb)

        if not with_head:
            yf_ref[j] = hf.astype(yf_ref.dtype)
            yb_ref[jr] = hb.astype(yb_ref.dtype)
        return hf, cf, hb, cb

    carry0 = (hf_scr[...], cf_scr[...], hb_scr[...], cb_scr[...])
    hf, cf, hb, cb = lax.fori_loop(0, t_block, step, carry0, unroll=unroll)

    hf_scr[...] = hf
    hb_scr[...] = hb
    cf_scr[...] = cf
    cb_scr[...] = cb

    if with_head:
        # hidden = cat(h_fwd_final, h_bwd_final) -> FC -> sigmoid (last layer only).
        @pl.when(tb == n_tb - 1)
        def _():
            z = (jnp.dot(hf.astype(fcwf_ref.dtype), fcwf_ref[...],
                         preferred_element_type=jnp.float32)
                 + jnp.dot(hb.astype(fcwb_ref.dtype), fcwb_ref[...],
                           preferred_element_type=jnp.float32)
                 + fcb_ref[...])
            out_ref[...] = jax.nn.sigmoid(z)


def _bilstm_layer(len_bcast, pg_f, pg_b, whh_bd, bias_f, bias_b, head_weights,
                  *, t_block, batch_block):
    Tp, Bp, G = pg_f.shape
    Hp = G // 4
    n_tb = Tp // t_block
    n_bb = Bp // batch_block
    with_head = head_weights is not None
    unroll = int(min(t_block, 8))          # cap unroll to bound vreg pressure

    kernel = functools.partial(_bilstm_kernel, t_block=t_block, hidden_pad=Hp,
                               seq_pad=Tp, with_head=with_head, unroll=unroll)

    const2 = lambda b, t: (0, 0)
    in_specs = [
        pl.BlockSpec((batch_block, Hp), lambda b, t: (b, 0)),               # lengths
        pl.BlockSpec((t_block, batch_block, G), lambda b, t: (t, b, 0)),    # pg fwd
        pl.BlockSpec((t_block, batch_block, G),
                     lambda b, t: (n_tb - 1 - t, b, 0)),                    # pg bwd
        pl.BlockSpec((2 * Hp, 2 * G), const2),                              # blockdiag Whh
        pl.BlockSpec((1, G), const2),                                       # bias fwd (f32)
        pl.BlockSpec((1, G), const2),                                       # bias bwd (f32)
    ]
    inputs = [len_bcast, pg_f, pg_b, whh_bd, bias_f, bias_b]

    if with_head:
        fcw_f, fcw_b, fcb = head_weights
        Op = fcw_f.shape[1]
        in_specs += [pl.BlockSpec((Hp, Op), const2),
                     pl.BlockSpec((Hp, Op), const2),
                     pl.BlockSpec((1, Op), const2)]
        inputs += [fcw_f, fcw_b, fcb]
        out_shape = jax.ShapeDtypeStruct((Bp, Op), jnp.float32)
        out_specs = pl.BlockSpec((batch_block, Op), lambda b, t: (b, 0))
    else:
        out_shape = (jax.ShapeDtypeStruct((Tp, Bp, Hp), jnp.bfloat16),      # y_fwd
                     jax.ShapeDtypeStruct((Tp, Bp, Hp), jnp.bfloat16))      # y_bwd
        out_specs = (pl.BlockSpec((t_block, batch_block, Hp),
                                  lambda b, t: (t, b, 0)),
                     pl.BlockSpec((t_block, batch_block, Hp),
                                  lambda b, t: (n_tb - 1 - t, b, 0)))

    scratch = [pltpu.VMEM((batch_block, Hp), jnp.float32) for _ in range(4)]

    return pl.pallas_call(
        kernel,
        out_shape=out_shape,
        grid_spec=pltpu.PrefetchScalarGridSpec(
            num_scalar_prefetch=0,
            grid=(n_bb, n_tb),
            in_specs=in_specs,
            out_specs=out_specs,
            scratch_shapes=scratch),
        compiler_params=pltpu.CompilerParams(
            dimension_semantics=("parallel", "arbitrary"),
            vmem_limit_bytes=_VMEM_LIMIT),
    )(*inputs)


# ----------------------------------------------------------------------------
# Sizing heuristics.
# ----------------------------------------------------------------------------
def _pick_t_block(T, batch_block, Hp, *, max_t_block=16,
                  vmem_budget=24 * 1024 * 1024):
    # Resident: blockdiag Whh (bf16) + 4 state scratch + lengths.
    fixed = (2 * Hp) * (8 * Hp) * 2 + 4 * batch_block * Hp * 4 + batch_block * Hp * 4
    # Per time step (double-buffered): bf16 pre-gates (2 dirs) + bf16 y (2 dirs).
    per_t = 2 * 2 * batch_block * 4 * Hp * 2 + 2 * 2 * batch_block * Hp * 2
    tb = max(1, min(max_t_block, (vmem_budget - fixed) // max(per_t, 1)))
    tb = 1 << (int(tb).bit_length() - 1)            # round down to a power of 2
    # Ensure >= 2 time grid steps so pg/y double-buffering actually overlaps DMA.
    while tb > 1 and _round_up(T, tb) // tb < 2:
        tb //= 2
    return max(int(tb), 1)


def _pick_row_block(Tp, Bp, target_rows=512):
    rt = Tp
    while rt % 2 == 0 and rt * Bp > target_rows:
        rt //= 2
    return rt * Bp


# ----------------------------------------------------------------------------
# Full classifier forward.
# ----------------------------------------------------------------------------
def classifier_forward(params, text, text_lengths):
    """text: (B, T) int32 tokens (padded); text_lengths: (B,) int32 (descending)."""
    B, T = text.shape
    H = params["lstm"][(0, "fwd")]["w_hh"].shape[1]
    n_layers = params["n_layers"]
    O = params["fc_w"].shape[1]

    Hp = _round_up(max(H, 1), 128)
    Bp = _round_up(max(B, 1), 16)          # full bf16 (16,128) sublane tiles
    Op = _round_up(max(O, 1), 128)

    # v7x megacore: split batch across the 2 TensorCores when each half is
    # still a full bf16 sublane tile (no-op / size-1 parallel axis otherwise).
    n_bb = 2 if (Bp % 32 == 0) else 1
    batch_block = Bp // n_bb

    t_block = _pick_t_block(T, batch_block, Hp)
    Tp = _round_up(T, t_block)
    row_block = _pick_row_block(Tp, Bp)

    # Embedding lookup — the gather stays in plain JAX (glue); table cast to
    # bf16 so the (Tp,Bp,E) intermediate round-trips HBM at half width.
    # TODO(synk): fuse the embedding gather into the layer-0 projection via
    # scalar-prefetch pl.Element row gather on the token ids.
    emb = jnp.take(params["embedding"].astype(jnp.bfloat16), text, axis=0)  # (B,T,E)
    x = jnp.transpose(emb, (1, 0, 2))                                       # (T,B,E)
    x = jnp.pad(x, ((0, Tp - T), (0, Bp - B), (0, 0)))
    E = x.shape[-1]

    lengths = jnp.pad(text_lengths.astype(jnp.int32), (0, Bp - B))          # pad -> 0
    len_bcast = jnp.broadcast_to(lengths[:, None], (Bp, Hp)).astype(jnp.int32)

    # Classifier head weights, split into fwd/bwd halves and lane-padded.
    fcw = params["fc_w"]                                                    # (2H, O)
    fcw_f = jnp.pad(fcw[:H], ((0, Hp - H), (0, Op - O))).astype(jnp.bfloat16)
    fcw_b = jnp.pad(fcw[H:], ((0, Hp - H), (0, Op - O))).astype(jnp.bfloat16)
    fcb = jnp.pad(params["fc_b"], (0, Op - O)).reshape(1, Op).astype(jnp.float32)

    src_f = x.reshape(Tp * Bp, E)       # layer-0 single source
    src_b = None
    out = None
    zero_h = jnp.zeros((Hp, 4 * Hp), jnp.float32)
    for l in range(n_layers):
        pf = params["lstm"][(l, "fwd")]
        pb = params["lstm"][(l, "bwd")]
        whh_f = _pack_gate_weight(pf["w_hh"], H, Hp, Hp)
        whh_b = _pack_gate_weight(pb["w_hh"], H, Hp, Hp)
        # Block-diagonal [Whh_f 0; 0 Whh_b] so fwd+bwd share one MXU matmul/step.
        whh_bd = jnp.concatenate(
            [jnp.concatenate([whh_f, zero_h], axis=1),
             jnp.concatenate([zero_h, whh_b], axis=1)], axis=0).astype(jnp.bfloat16)
        bf = _pack_gate_bias(pf["b"], H, Hp)
        bb = _pack_gate_bias(pb["b"], H, Hp)

        if l == 0:
            wf = _pack_gate_weight(pf["w_ih"], H, Hp, E).astype(jnp.bfloat16)
            wb = _pack_gate_weight(pb["w_ih"], H, Hp, E).astype(jnp.bfloat16)
            pg_f, pg_b = _input_proj1(src_f, wf, wb, row_block=row_block)
        else:
            # Next-layer input is concat([y_fwd, y_bwd]); split W_ih columns
            # instead of materializing the concat.
            wff = _pack_gate_weight(pf["w_ih"][:, :H], H, Hp, Hp).astype(jnp.bfloat16)
            wfb = _pack_gate_weight(pf["w_ih"][:, H:], H, Hp, Hp).astype(jnp.bfloat16)
            wbf = _pack_gate_weight(pb["w_ih"][:, :H], H, Hp, Hp).astype(jnp.bfloat16)
            wbb = _pack_gate_weight(pb["w_ih"][:, H:], H, Hp, Hp).astype(jnp.bfloat16)
            pg_f, pg_b = _input_proj2(src_f, src_b, wff, wfb, wbf, wbb,
                                      row_block=row_block)

        pg_f = pg_f.reshape(Tp, Bp, 4 * Hp)
        pg_b = pg_b.reshape(Tp, Bp, 4 * Hp)

        last = (l == n_layers - 1)
        if last:
            out = _bilstm_layer(len_bcast, pg_f, pg_b, whh_bd, bf, bb,
                                (fcw_f, fcw_b, fcb),
                                t_block=t_block, batch_block=batch_block)
        else:
            y_f, y_b = _bilstm_layer(len_bcast, pg_f, pg_b, whh_bd, bf, bb, None,
                                     t_block=t_block, batch_block=batch_block)
            src_f = y_f.reshape(Tp * Bp, Hp)
            src_b = y_b.reshape(Tp * Bp, Hp)
        # TODO(synk): nn.LSTM inter-layer dropout (p=0.2) is training-only; inference is a no-op.

    return out[:B, :O]


# ----------------------------------------------------------------------------
# Pure-JAX reference (f32) for a correctness sanity check.
# ----------------------------------------------------------------------------
def _reference_forward(params, text, text_lengths):
    emb = jnp.take(params["embedding"], text, axis=0).astype(jnp.float32)  # (B,T,E)
    B, T, _ = emb.shape
    H = params["lstm"][(0, "fwd")]["w_hh"].shape[1]
    n_layers = params["n_layers"]
    mask = (jnp.arange(T)[None, :] < text_lengths[:, None]).astype(jnp.float32)

    def cell(x_t, h, c, p):
        g = x_t @ p["w_ih"].T + h @ p["w_hh"].T + p["b"]
        i = jax.nn.sigmoid(g[:, :H]); f = jax.nn.sigmoid(g[:, H:2 * H])
        gg = jnp.tanh(g[:, 2 * H:3 * H]); o = jax.nn.sigmoid(g[:, 3 * H:])
        c_n = f * c + i * gg
        return o * jnp.tanh(c_n), c_n

    layer_in = emb
    hf = hb = None
    for l in range(n_layers):
        pf = params["lstm"][(l, "fwd")]; pb = params["lstm"][(l, "bwd")]
        hf = cf = hb = cb = jnp.zeros((B, H), jnp.float32)
        yf = [None] * T; yb = [None] * T
        for t in range(T):
            m = mask[:, t][:, None]
            hn, cn = cell(layer_in[:, t], hf, cf, pf)
            hf = m * hn + (1 - m) * hf; cf = m * cn + (1 - m) * cf
            yf[t] = hf
            tr = T - 1 - t
            mr = mask[:, tr][:, None]
            hn, cn = cell(layer_in[:, tr], hb, cb, pb)
            hb = mr * hn + (1 - mr) * hb; cb = mr * cn + (1 - mr) * cb
            yb[tr] = hb
        layer_in = jnp.concatenate(
            [jnp.stack(yf, axis=1), jnp.stack(yb, axis=1)], axis=-1)
    hidden = jnp.concatenate([hf, hb], axis=1)
    return jax.nn.sigmoid(hidden @ params["fc_w"] + params["fc_b"])


# ----------------------------------------------------------------------------
# Deterministic parameter construction (synthetic, no checkpoint).
# ----------------------------------------------------------------------------
def make_params(key, vocab_size, embedding_dim, hidden_dim, output_dim, n_layers):
    keys = jax.random.split(key, 3 + 8 * n_layers)
    k = iter(keys)
    scale = 1.0 / jnp.sqrt(hidden_dim)

    params = {
        "n_layers": n_layers,
        "embedding": jax.random.normal(next(k), (vocab_size, embedding_dim),
                                       jnp.float32),
        "lstm": {},
    }
    for l in range(n_layers):
        in_dim = embedding_dim if l == 0 else 2 * hidden_dim
        for d in ("fwd", "bwd"):
            w_ih = jax.random.uniform(next(k), (4 * hidden_dim, in_dim),
                                      jnp.float32, -scale, scale)
            w_hh = jax.random.uniform(next(k), (4 * hidden_dim, hidden_dim),
                                      jnp.float32, -scale, scale)
            b_ih = jax.random.uniform(next(k), (4 * hidden_dim,),
                                      jnp.float32, -scale, scale)
            b_hh = jax.random.uniform(next(k), (4 * hidden_dim,),
                                      jnp.float32, -scale, scale)
            params["lstm"][(l, d)] = {"w_ih": w_ih, "w_hh": w_hh,
                                      "b": b_ih + b_hh}
    params["fc_w"] = jax.random.uniform(next(k), (2 * hidden_dim, output_dim),
                                        jnp.float32, -scale, scale)
    params["fc_b"] = jax.random.uniform(next(k), (output_dim,),
                                        jnp.float32, -scale, scale)
    return params


if __name__ == "__main__":
    # Small shapes consistent with the module.
    vocab_size = 50
    embedding_dim = 16
    hidden_dim = 32
    output_dim = 1
    n_layers = 2
    batch = 2
    seq = 8

    key = jax.random.PRNGKey(0)
    pkey, tkey = jax.random.split(key)
    params = make_params(pkey, vocab_size, embedding_dim, hidden_dim,
                         output_dim, n_layers)

    text = jax.random.randint(tkey, (batch, seq), 0, vocab_size, jnp.int32)
    # pack_padded_sequence default requires descending lengths.
    text_lengths = jnp.array([seq, 5], dtype=jnp.int32)

    out = classifier_forward(params, text, text_lengths)     # (batch, output_dim)
    out = jax.block_until_ready(out)

    ref = _reference_forward(params, text, text_lengths)

    assert out.shape == (batch, output_dim)
    assert bool(jnp.all(jnp.isfinite(out)))
    assert bool(jnp.all((out >= 0.0) & (out <= 1.0)))
    # bf16 matmul operands / bf16 pre-gate storage with f32 accumulation
    # -> small drift vs the f32 reference.
    assert bool(jnp.allclose(out, ref, atol=5e-2))
    print("KERNEL_OK")
</pallas_src>

<mosaic_0001>
module attributes {stable_mosaic.version = 11 : i64} {
  func.func @_in_proj1_kernel(%arg0: i32, %arg1: memref<128x16xbf16, #tpu.memory_space<vmem>>, %arg2: memref<16x512xbf16, #tpu.memory_space<vmem>>, %arg3: memref<16x512xbf16, #tpu.memory_space<vmem>>, %arg4: memref<128x512xbf16, #tpu.memory_space<vmem>>, %arg5: memref<128x512xbf16, #tpu.memory_space<vmem>>) attributes {dimension_semantics = [#tpu.dimension_semantics<parallel>], iteration_bounds = array<i64: 1>, scalar_prefetch = 0 : i64, scratch_operands = 0 : i64, tpu.core_type = #tpu.core_type<tc>, window_params = [{transform_indices = @transform_0, window_bounds = array<i64: 128, 16>}, {pipeline_mode = #tpu.pipeline_mode<synchronous>, transform_indices = @transform_1, window_bounds = array<i64: 16, 512>}, {pipeline_mode = #tpu.pipeline_mode<synchronous>, transform_indices = @transform_2, window_bounds = array<i64: 16, 512>}, {transform_indices = @transform_3, window_bounds = array<i64: 128, 512>}, {transform_indices = @transform_4, window_bounds = array<i64: 128, 512>}]} {
    %c0 = arith.constant 0 : index
    %c0_0 = arith.constant 0 : index
    %0 = vector.load %arg1[%c0, %c0_0] : memref<128x16xbf16, #tpu.memory_space<vmem>>, vector<128x16xbf16>
    %c0_1 = arith.constant 0 : index
    %c0_2 = arith.constant 0 : index
    %1 = vector.load %arg2[%c0_1, %c0_2] : memref<16x512xbf16, #tpu.memory_space<vmem>>, vector<16x512xbf16>
    %cst = arith.constant dense<0.000000e+00> : vector<128x512xf32>
    %2 = tpu.matmul %0, %1, %cst {dimension_numbers = #tpu.dot_dimension_numbers<[1], [0], [0], [1], [0, 0, 1, 1], [], []>} : vector<128x16xbf16>, vector<16x512xbf16>, vector<128x512xf32> -> vector<128x512xf32>
    %3 = arith.truncf %2 : vector<128x512xf32> to vector<128x512xbf16>
    %c0_3 = arith.constant 0 : index
    %c0_4 = arith.constant 0 : index
    %4 = vector.load %arg4[%c0_3, %c0_4] : memref<128x512xbf16, #tpu.memory_space<vmem>>, vector<128x512xbf16>
    tpu.vector_store %arg4[%c0_3, %c0_4], %3 {strides = array<i32>} : memref<128x512xbf16, #tpu.memory_space<vmem>>, vector<128x512xbf16>,
    %c0_5 = arith.constant 0 : index
    %c0_6 = arith.constant 0 : index
    %5 = vector.load %arg3[%c0_5, %c0_6] : memref<16x512xbf16, #tpu.memory_space<vmem>>, vector<16x512xbf16>
    %cst_7 = arith.constant dense<0.000000e+00> : vector<128x512xf32>
    %6 = tpu.matmul %0, %5, %cst_7 {dimension_numbers = #tpu.dot_dimension_numbers<[1], [0], [0], [1], [0, 0, 1, 1], [], []>} : vector<128x16xbf16>, vector<16x512xbf16>, vector<128x512xf32> -> vector<128x512xf32>
    %7 = arith.truncf %6 : vector<128x512xf32> to vector<128x512xbf16>
    %c0_8 = arith.constant 0 : index
    %c0_9 = arith.constant 0 : index
    %8 = vector.load %arg5[%c0_8, %c0_9] : memref<128x512xbf16, #tpu.memory_space<vmem>>, vector<128x512xbf16>
    tpu.vector_store %arg5[%c0_8, %c0_9], %7 {strides = array<i32>} : memref<128x512xbf16, #tpu.memory_space<vmem>>, vector<128x512xbf16>,
    return
  }
  func.func @transform_0(%arg0: i32) -> (i32, i32) {
    %c0_i32 = arith.constant 0 : i32
    %c0_i32_0 = arith.constant 0 : i32
    return %arg0, %c0_i32 : i32, i32
  }
  func.func @transform_1(%arg0: i32) -> (i32, i32) {
    %c0_i32 = arith.constant 0 : i32
    %c0_i32_0 = arith.constant 0 : i32
    %c0_i32_1 = arith.constant 0 : i32
    return %c0_i32, %c0_i32_0 : i32, i32
  }
  func.func @transform_2(%arg0: i32) -> (i32, i32) {
    %c0_i32 = arith.constant 0 : i32
    %c0_i32_0 = arith.constant 0 : i32
    %c0_i32_1 = arith.constant 0 : i32
    return %c0_i32, %c0_i32_0 : i32, i32
  }
  func.func @transform_3(%arg0: i32) -> (i32, i32) {
    %c0_i32 = arith.constant 0 : i32
    %c0_i32_0 = arith.constant 0 : i32
    return %arg0, %c0_i32 : i32, i32
  }
  func.func @transform_4(%arg0: i32) -> (i32, i32) {
    %c0_i32 = arith.constant 0 : i32
    %c0_i32_0 = arith.constant 0 : i32
    return %arg0, %c0_i32 : i32, i32
  }
}

</mosaic_0001>

<llo_original>
// kernel: tpu_custom_call.1
$region0: #{tpu_custom_call.1}
  #allocation0 [shape = 'u32[]', space=smem, size = 0x4, offset = 0x4, fixed_abs, tag = 'smem constant byte address 0x4 - core index']
  #allocation1 [shape = 'u32[144,128]{1,0:T(1,128)}', space=vmem, size = 0x12000, scoped, tag = 'internal scratch']
  %s0 = inlined_call_operand.vmem [shape: bf16[128,16], index: 0, kind: input, shape index: {}]
  %s1 = inlined_call_operand.vmem [shape: bf16[16,512], index: 1, kind: input, shape index: {}]
  %s2 = inlined_call_operand.vmem [shape: bf16[16,512], index: 2, kind: input, shape index: {}]
  %s3 = inlined_call_operand.hbm [shape: bf16[128,512], index: 3, kind: output, shape index: {0}]
  %s4 = inlined_call_operand.hbm [shape: bf16[128,512], index: 4, kind: output, shape index: {1}]
  %5 = xla_tuple %s3, %s4
  %s6 = sld [smem:[#allocation0]]
  $region30: #{tpu_custom_call.1} parent=0
    _
  %s8 = ssub.s32 1, %s6
  %s9 = scalar_select 0, %s8, %s6
  $region1: #{tpu_custom_call.1} parent=0
    #allocation2 [shape = 'u8[131072]{0}', space=vmem, size = 0x20000, scoped, tag = 'output window, operand 0, single buffered']
    #allocation3 [shape = 's32[1]{0}', space=sflag, size = 0x4, scoped, tag = 'scoped memory for tpu_custom_call.1']
    #allocation4 [shape = 'u8[131072]{0}', space=vmem, size = 0x20000, scoped, tag = 'output window, operand 1, single buffered']
    #allocation5 [shape = 's32[1]{0}', space=sflag, size = 0x4, scoped, tag = 'scoped memory for tpu_custom_call.1']
    %10 = vsyncpa [#allocation3], 0
    %11 = vsyncpa [#allocation5], 0
    // Predicated region
    $region2: #{tpu_custom_call.1} parent=1 // pred_check
      _
    $region3: #{tpu_custom_call.1} parent=1 // pred_check_branch
      %13 = sbr.rel (0) target = $region5
    $region4: #{tpu_custom_call.1} parent=1 // pred_region
      _
    $region5: #{tpu_custom_call.1} parent=1 // pred_fallthru
      _
    // Predicated region
    $region6: #{tpu_custom_call.1} parent=1 // pred_check
      _
    $region7: #{tpu_custom_call.1} parent=1 // pred_check_branch
      %15 = sbr.rel (0) target = $region9
    $region8: #{tpu_custom_call.1} parent=1 // pred_region
      _
    $region9: #{tpu_custom_call.1} parent=1 // pred_fallthru
      _
    // Predicated region
    $region10: #{tpu_custom_call.1} parent=1 // pred_check
      _
    $region11: #{tpu_custom_call.1} parent=1 // pred_check_branch
      %17 = sbr.rel (0) target = $region13
    $region12: #{tpu_custom_call.1} parent=1 // pred_region
      _
    $region13: #{tpu_custom_call.1} parent=1 // pred_fallthru
      _
    %v19 = vld [vmem:[%s0] sm:$0xf]
    %v20 = vld [vmem:[%s0 + $0x4] sm:$0xf]
    %v21 = vld [vmem:[%s0 + $0x8] sm:$0xf]
    %v22 = vld [vmem:[%s0 + $0xc] sm:$0xf]
    %v23 = vld [vmem:[%s0 + $0x10] sm:$0xf]
    %v24 = vld [vmem:[%s0 + $0x14] sm:$0xf]
    %v25 = vld [vmem:[%s0 + $0x18] sm:$0xf]
    %v26 = vld [vmem:[%s0 + $0x1c] sm:$0xf]
    %v27 = vld [vmem:[%s0 + $0x20] sm:$0xf]
    %v28 = vld [vmem:[%s0 + $0x24] sm:$0xf]
    %v29 = vld [vmem:[%s0 + $0x28] sm:$0xf]
    %v30 = vld [vmem:[%s0 + $0x2c] sm:$0xf]
    %v31 = vld [vmem:[%s0 + $0x30] sm:$0xf]
    %v32 = vld [vmem:[%s0 + $0x34] sm:$0xf]
    %v33 = vld [vmem:[%s0 + $0x38] sm:$0xf]
    %v34 = vld [vmem:[%s0 + $0x3c] sm:$0xf]
    %v35 = vld [vmem:[%s1] sm:$0xff]
    %v36 = vld [vmem:[%s1 + $0x8] sm:$0xff]
    %v37 = vld [vmem:[%s1 + $0x10] sm:$0xff]
    %v38 = vld [vmem:[%s1 + $0x18] sm:$0xff]
    %v55 = vunpack.c.l.b16 %v19
    %v56 = vunpack.c.l.b16 %v20
    %v57 = vunpack.c.l.b16 %v21
    %v58 = vunpack.c.l.b16 %v22
    %v59 = vunpack.c.l.b16 %v23
    %v60 = vunpack.c.l.b16 %v24
    %v61 = vunpack.c.l.b16 %v25
    %v62 = vunpack.c.l.b16 %v26
    %v63 = vunpack.c.l.b16 %v27
    %v64 = vunpack.c.l.b16 %v28
    %v65 = vunpack.c.l.b16 %v29
    %v66 = vunpack.c.l.b16 %v30
    %v67 = vunpack.c.l.b16 %v31
    %v68 = vunpack.c.l.b16 %v32
    %v69 = vunpack.c.l.b16 %v33
    %v70 = vunpack.c.l.b16 %v34
    %v71 = vpack.c.b16 %v56, %v55
    %v72 = vpack.c.b16 %v58, %v57
    %v73 = vpack.c.b16 %v60, %v59
    %v74 = vpack.c.b16 %v62, %v61
    %v75 = vpack.c.b16 %v64, %v63
    %v76 = vpack.c.b16 %v66, %v65
    %v77 = vpack.c.b16 %v68, %v67
    %v78 = vpack.c.b16 %v70, %v69
    %v83 = vunpack.c.l.b16 %v35
    %v84 = vunpack.c.h.b16 %v35
    %v85 = vunpack.c.l.b16 %v36
    %v86 = vunpack.c.h.b16 %v36
    %v87 = vunpack.c.l.b16 %v37
    %v88 = vunpack.c.h.b16 %v37
    %v89 = vunpack.c.l.b16 %v38
    %v90 = vunpack.c.h.b16 %v38
    %v91 = vpack.c.b16 %v87, %v83
    %v92 = vpack.c.b16 %v88, %v84
    %v93 = vpack.c.b16 %v89, %v85
    %v94 = vpack.c.b16 %v90, %v86
    %vm99 = vcmask 130048
    %v101 = vsel %vm99, %v71, 0
    %v104 = vsel %vm99, %v72, 0
    %v107 = vsel %vm99, %v73, 0
    %v110 = vsel %vm99, %v74, 0
    %v113 = vsel %vm99, %v75, 0
    %v116 = vsel %vm99, %v76, 0
    %v119 = vsel %vm99, %v77, 0
    %v122 = vsel %vm99, %v78, 0
    %124 = vmatprep.subr.bf16.mxu0 0
    %125 = vmatpush1.bf16.msra.mxu0 0
    %126 = vmatprep.subr.bf16.mxu0 0
    %127 = vmatpush1.bf16.msra.mxu0 0
    %128 = vmatprep.subr.bf16.mxu0 0
    %129 = vmatpush1.bf16.msra.mxu0 0
    %130 = vmatprep.subr.bf16.mxu0 0
    %131 = vmatpush1.bf16.msra.mxu0 0
    %132 = vmatprep.subr.bf16.mxu0 0
    %133 = vmatpush1.bf16.msra.mxu0 0
    %134 = vmatprep.subr.bf16.mxu0 0
    %135 = vmatpush1.bf16.msra.mxu0 0
    %136 = vmatprep.subr.bf16.mxu0 0
    %137 = vmatpush1.bf16.msra.mxu0 0
    %138 = vmatprep.subr.bf16.mxu0 %v92
    %139 = vmatpush1.bf16.msra.mxu0 %v91
    %140 = vmatprep.subr.bf16.mxu0 0
    %141 = vmatpush2.bf16.msra.mxu0 0
    %142 = vmatprep.subr.bf16.mxu0 0
    %143 = vmatpush2.bf16.msra.mxu0 0
    %144 = vmatprep.subr.bf16.mxu0 0
    %145 = vmatpush2.bf16.msra.mxu0 0
    %146 = vmatprep.subr.bf16.mxu0 0
    %147 = vmatpush2.bf16.msra.mxu0 0
    %148 = vmatprep.subr.bf16.mxu0 0
    %149 = vmatpush2.bf16.msra.mxu0 0
    %150 = vmatprep.subr.bf16.mxu0 0
    %151 = vmatpush2.bf16.msra.mxu0 0
    %152 = vmatprep.subr.bf16.mxu0 0
    %153 = vmatpush2.bf16.msra.mxu0 0
    %154 = vmatprep.subr.bf16.mxu0 0
    %155 = vmatpush2.bf16.msra.mxu0 0
    %156 = vmatprep.mubr.bf16.mxu0 0
    %157 = vmatmul.mubr.bf16.gmra.mxu0 %v101
    %v158 = vpop.f32.mrf.mxu0
    %v159 = vadd.f32 0.0, %v158
    %v160 = vpop.f32.mrf.mxu0
    %v161 = vadd.f32 0.0, %v160
    %v162 = vpop.f32.mrf.mxu0
    %v163 = vadd.f32 0.0, %v162
    %v164 = vpop.f32.mrf.mxu0
    %v165 = vadd.f32 0.0, %v164
    %166 = vmatprep.mubr.bf16.mxu0 0
    %167 = vmatmul.mubr.bf16.gmra.mxu0 %v104
    %v168 = vpop.f32.mrf.mxu0
    %v169 = vadd.f32 0.0, %v168
    %v170 = vpop.f32.mrf.mxu0
    %v171 = vadd.f32 0.0, %v170
    %v172 = vpop.f32.mrf.mxu0
    %v173 = vadd.f32 0.0, %v172
    %v174 = vpop.f32.mrf.mxu0
    %v175 = vadd.f32 0.0, %v174
    %176 = vmatprep.mubr.bf16.mxu0 0
    %177 = vmatmul.mubr.bf16.gmra.mxu0 %v107
    %v178 = vpop.f32.mrf.mxu0
    %v179 = vadd.f32 0.0, %v178
    %v180 = vpop.f32.mrf.mxu0
    %v181 = vadd.f32 0.0, %v180
    %v182 = vpop.f32.mrf.mxu0
    %v183 = vadd.f32 0.0, %v182
    %v184 = vpop.f32.mrf.mxu0
    %v185 = vadd.f32 0.0, %v184
    %186 = vmatprep.mubr.bf16.mxu0 0
    %187 = vmatmul.mubr.bf16.gmra.mxu0 %v110
    %v188 = vpop.f32.mrf.mxu0
    %v189 = vadd.f32 0.0, %v188
    %v190 = vpop.f32.mrf.mxu0
    %v191 = vadd.f32 0.0, %v190
    %v192 = vpop.f32.mrf.mxu0
    %v193 = vadd.f32 0.0, %v192
    %v194 = vpop.f32.mrf.mxu0
    %v195 = vadd.f32 0.0, %v194
    %196 = vmatprep.mubr.bf16.mxu0 0
    %197 = vmatmul.mubr.bf16.gmra.mxu0 %v113
    %v198 = vpop.f32.mrf.mxu0
    %v199 = vadd.f32 0.0, %v198
    %v200 = vpop.f32.mrf.mxu0
    %v201 = vadd.f32 0.0, %v200
    %v202 = vpop.f32.mrf.mxu0
    %v203 = vadd.f32 0.0, %v202
    %v204 = vpop.f32.mrf.mxu0
    %v205 = vadd.f32 0.0, %v204
    %206 = vmatprep.mubr.bf16.mxu0 0
    %207 = vmatmul.mubr.bf16.gmra.mxu0 %v116
    %v208 = vpop.f32.mrf.mxu0
    %v209 = vadd.f32 0.0, %v208
    %v210 = vpop.f32.mrf.mxu0
    %v211 = vadd.f32 0.0, %v210
    %v212 = vpop.f32.mrf.mxu0
    %v213 = vadd.f32 0.0, %v212
    %v214 = vpop.f32.mrf.mxu0
    %v215 = vadd.f32 0.0, %v214
    %216 = vmatprep.mubr.bf16.mxu0 0
    %217 = vmatmul.mubr.bf16.gmra.mxu0 %v119
    %v218 = vpop.f32.mrf.mxu0
    %v219 = vadd.f32 0.0, %v218
    %v220 = vpop.f32.mrf.mxu0
    %v221 = vadd.f32 0.0, %v220
    %v222 = vpop.f32.mrf.mxu0
    %v223 = vadd.f32 0.0, %v222
    %v224 = vpop.f32.mrf.mxu0
    %v225 = vadd.f32 0.0, %v224
    %226 = vmatprep.mubr.bf16.mxu0 0
    %227 = vmatmul.mubr.bf16.gmra.mxu0 %v122
    %v228 = vpop.f32.mrf.mxu0
    %v229 = vadd.f32 0.0, %v228
    %v230 = vpop.f32.mrf.mxu0
    %v231 = vadd.f32 0.0, %v230
    %v232 = vpop.f32.mrf.mxu0
    %v233 = vadd.f32 0.0, %v232
    %v234 = vpop.f32.mrf.mxu0
    %v235 = vadd.f32 0.0, %v234
    %236 = vdwg.mxu0
    %237 = vmatprep.subr.bf16.mxu0 0
    %238 = vmatpush1.bf16.msra.mxu0 0
    %239 = vmatprep.subr.bf16.mxu0 0
    %240 = vmatpush1.bf16.msra.mxu0 0
    %241 = vmatprep.subr.bf16.mxu0 0
    %242 = vmatpush1.bf16.msra.mxu0 0
    %243 = vmatprep.subr.bf16.mxu0 0
    %244 = vmatpush1.bf16.msra.mxu0 0
    %245 = vmatprep.subr.bf16.mxu0 0
    %246 = vmatpush1.bf16.msra.mxu0 0
    %247 = vmatprep.subr.bf16.mxu0 0
    %248 = vmatpush1.bf16.msra.mxu0 0
    %249 = vmatprep.subr.bf16.mxu0 0
    %250 = vmatpush1.bf16.msra.mxu0 0
    %251 = vmatprep.subr.bf16.mxu0 %v94
    %252 = vmatpush1.bf16.msra.mxu0 %v93
    %253 = vmatprep.subr.bf16.mxu0 0
    %254 = vmatpush2.bf16.msra.mxu0 0
    %255 = vmatprep.subr.bf16.mxu0 0
    %256 = vmatpush2.bf16.msra.mxu0 0
    %257 = vmatprep.subr.bf16.mxu0 0
    %258 = vmatpush2.bf16.msra.mxu0 0
    %259 = vmatprep.subr.bf16.mxu0 0
    %260 = vmatpush2.bf16.msra.mxu0 0
    %261 = vmatprep.subr.bf16.mxu0 0
    %262 = vmatpush2.bf16.msra.mxu0 0
    %263 = vmatprep.subr.bf16.mxu0 0
    %264 = vmatpush2.bf16.msra.mxu0 0
    %265 = vmatprep.subr.bf16.mxu0 0
    %266 = vmatpush2.bf16.msra.mxu0 0
    %267 = vmatprep.subr.bf16.mxu0 0
    %268 = vmatpush2.bf16.msra.mxu0 0
    %269 = vmatprep.mubr.bf16.mxu0 0
    %270 = vmatmul.mubr.bf16.gmra.mxu0 %v101
    %v271 = vpop.f32.mrf.mxu0
    %v272 = vadd.f32 0.0, %v271
    %v273 = vpop.f32.mrf.mxu0
    %v274 = vadd.f32 0.0, %v273
    %v275 = vpop.f32.mrf.mxu0
    %v276 = vadd.f32 0.0, %v275
    %v277 = vpop.f32.mrf.mxu0
    %v278 = vadd.f32 0.0, %v277
    %279 = vmatprep.mubr.bf16.mxu0 0
    %280 = vmatmul.mubr.bf16.gmra.mxu0 %v104
    %v281 = vpop.f32.mrf.mxu0
    %v282 = vadd.f32 0.0, %v281
    %v283 = vpop.f32.mrf.mxu0
    %v284 = vadd.f32 0.0, %v283
    %v285 = vpop.f32.mrf.mxu0
    %v286 = vadd.f32 0.0, %v285
    %v287 = vpop.f32.mrf.mxu0
    %v288 = vadd.f32 0.0, %v287
    %289 = vmatprep.mubr.bf16.mxu0 0
    %290 = vmatmul.mubr.bf16.gmra.mxu0 %v107
    %v291 = vpop.f32.mrf.mxu0
    %v292 = vadd.f32 0.0, %v291
    %v293 = vpop.f32.mrf.mxu0
    %v294 = vadd.f32 0.0, %v293
    %v295 = vpop.f32.mrf.mxu0
    %v296 = vadd.f32 0.0, %v295
    %v297 = vpop.f32.mrf.mxu0
    %v298 = vadd.f32 0.0, %v297
    %299 = vmatprep.mubr.bf16.mxu0 0
    %300 = vmatmul.mubr.bf16.gmra.mxu0 %v110
    %v301 = vpop.f32.mrf.mxu0
    %v302 = vadd.f32 0.0, %v301
    %v303 = vpop.f32.mrf.mxu0
    %v304 = vadd.f32 0.0, %v303
    %v305 = vpop.f32.mrf.mxu0
    %v306 = vadd.f32 0.0, %v305
    %v307 = vpop.f32.mrf.mxu0
    %v308 = vadd.f32 0.0, %v307
    %309 = vmatprep.mubr.bf16.mxu0 0
    %310 = vmatmul.mubr.bf16.gmra.mxu0 %v113
    %v311 = vpop.f32.mrf.mxu0
    %v312 = vadd.f32 0.0, %v311
    %v313 = vpop.f32.mrf.mxu0
    %v314 = vadd.f32 0.0, %v313
    %v315 = vpop.f32.mrf.mxu0
    %v316 = vadd.f32 0.0, %v315
    %v317 = vpop.f32.mrf.mxu0
    %v318 = vadd.f32 0.0, %v317
    %319 = vmatprep.mubr.bf16.mxu0 0
    %320 = vmatmul.mubr.bf16.gmra.mxu0 %v116
    %v321 = vpop.f32.mrf.mxu0
    %v322 = vadd.f32 0.0, %v321
    %v323 = vpop.f32.mrf.mxu0
    %v324 = vadd.f32 0.0, %v323
    %v325 = vpop.f32.mrf.mxu0
    %v326 = vadd.f32 0.0, %v325
    %v327 = vpop.f32.mrf.mxu0
    %v328 = vadd.f32 0.0, %v327
    %329 = vmatprep.mubr.bf16.mxu0 0
    %330 = vmatmul.mubr.bf16.gmra.mxu0 %v119
    %v331 = vpop.f32.mrf.mxu0
    %v332 = vadd.f32 0.0, %v331
    %v333 = vpop.f32.mrf.mxu0
    %v334 = vadd.f32 0.0, %v333
    %v335 = vpop.f32.mrf.mxu0
    %v336 = vadd.f32 0.0, %v335
    %v337 = vpop.f32.mrf.mxu0
    %v338 = vadd.f32 0.0, %v337
    %339 = vmatprep.mubr.bf16.mxu0 0
    %340 = vmatmul.mubr.bf16.gmra.mxu0 %v122
    %v341 = vpop.f32.mrf.mxu0
    %v342 = vadd.f32 0.0, %v341
    %v343 = vpop.f32.mrf.mxu0
    %v344 = vadd.f32 0.0, %v343
    %v345 = vpop.f32.mrf.mxu0
    %v346 = vadd.f32 0.0, %v345
    %v347 = vpop.f32.mrf.mxu0
    %v348 = vadd.f32 0.0, %v347
    %349 = vdwg.mxu0
    %v350 = vpack.c.bf16 %v163, %v159
    %v351 = vpack.c.bf16 %v165, %v161
    %v352 = vpack.c.bf16 %v276, %v272
    %v353 = vpack.c.bf16 %v278, %v274
    %v354 = vpack.c.bf16 %v173, %v169
    %v355 = vpack.c.bf16 %v175, %v171
    %v356 = vpack.c.bf16 %v286, %v282
    %v357 = vpack.c.bf16 %v288, %v284
    %v358 = vpack.c.bf16 %v183, %v179
    %v359 = vpack.c.bf16 %v185, %v181
    %v360 = vpack.c.bf16 %v296, %v292
    %v361 = vpack.c.bf16 %v298, %v294
    %v362 = vpack.c.bf16 %v193, %v189
    %v363 = vpack.c.bf16 %v195, %v191
    %v364 = vpack.c.bf16 %v306, %v302
    %v365 = vpack.c.bf16 %v308, %v304
    %v366 = vpack.c.bf16 %v203, %v199
    %v367 = vpack.c.bf16 %v205, %v201
    %v368 = vpack.c.bf16 %v316, %v312
    %v369 = vpack.c.bf16 %v318, %v314
    %v370 = vpack.c.bf16 %v213, %v209
    %v371 = vpack.c.bf16 %v215, %v211
    %v372 = vpack.c.bf16 %v326, %v322
    %v373 = vpack.c.bf16 %v328, %v324
    %v374 = vpack.c.bf16 %v223, %v219
    %v375 = vpack.c.bf16 %v225, %v221
    %v376 = vpack.c.bf16 %v336, %v332
    %v377 = vpack.c.bf16 %v338, %v334
    %v378 = vpack.c.bf16 %v233, %v229
    %v379 = vpack.c.bf16 %v235, %v231
    %v380 = vpack.c.bf16 %v346, %v342
    %v381 = vpack.c.bf16 %v348, %v344
    %v414 = vunpack.c.l.b16 %v350
    %v415 = vunpack.c.l.b16 %v351
    %v416 = vunpack.c.l.b16 %v352
    %v417 = vunpack.c.l.b16 %v353
    %v418 = vunpack.c.h.b16 %v350
    %v419 = vunpack.c.h.b16 %v351
    %v420 = vunpack.c.h.b16 %v352
    %v421 = vunpack.c.h.b16 %v353
    %v422 = vunpack.c.l.b16 %v354
    %v423 = vunpack.c.l.b16 %v355
    %v424 = vunpack.c.l.b16 %v356
    %v425 = vunpack.c.l.b16 %v357
    %v426 = vunpack.c.h.b16 %v354
    %v427 = vunpack.c.h.b16 %v355
    %v428 = vunpack.c.h.b16 %v356
    %v429 = vunpack.c.h.b16 %v357
    %v430 = vunpack.c.l.b16 %v358
    %v431 = vunpack.c.l.b16 %v359
    %v432 = vunpack.c.l.b16 %v360
    %v433 = vunpack.c.l.b16 %v361
    %v434 = vunpack.c.h.b16 %v358
    %v435 = vunpack.c.h.b16 %v359
    %v436 = vunpack.c.h.b16 %v360
    %v437 = vunpack.c.h.b16 %v361
    %v438 = vunpack.c.l.b16 %v362
    %v439 = vunpack.c.l.b16 %v363
    %v440 = vunpack.c.l.b16 %v364
    %v441 = vunpack.c.l.b16 %v365
    %v442 = vunpack.c.h.b16 %v362
    %v443 = vunpack.c.h.b16 %v363
    %v444 = vunpack.c.h.b16 %v364
    %v445 = vunpack.c.h.b16 %v365
    %v446 = vunpack.c.l.b16 %v366
    %v447 = vunpack.c.l.b16 %v367
    %v448 = vunpack.c.l.b16 %v368
    %v449 = vunpack.c.l.b16 %v369
    %v450 = vunpack.c.h.b16 %v366
    %v451 = vunpack.c.h.b16 %v367
    %v452 = vunpack.c.h.b16 %v368
    %v453 = vunpack.c.h.b16 %v369
    %v454 = vunpack.c.l.b16 %v370
    %v455 = vunpack.c.l.b16 %v371
    %v456 = vunpack.c.l.b16 %v372
    %v457 = vunpack.c.l.b16 %v373
    %v458 = vunpack.c.h.b16 %v370
    %v459 = vunpack.c.h.b16 %v371
    %v460 = vunpack.c.h.b16 %v372
    %v461 = vunpack.c.h.b16 %v373
    %v462 = vunpack.c.l.b16 %v374
    %v463 = vunpack.c.l.b16 %v375
    %v464 = vunpack.c.l.b16 %v376
    %v465 = vunpack.c.l.b16 %v377
    %v466 = vunpack.c.h.b16 %v374
    %v467 = vunpack.c.h.b16 %v375
    %v468 = vunpack.c.h.b16 %v376
    %v469 = vunpack.c.h.b16 %v377
    %v470 = vunpack.c.l.b16 %v378
    %v471 = vunpack.c.l.b16 %v379
    %v472 = vunpack.c.l.b16 %v380
    %v473 = vunpack.c.l.b16 %v381
    %v474 = vunpack.c.h.b16 %v378
    %v475 = vunpack.c.h.b16 %v379
    %v476 = vunpack.c.h.b16 %v380
    %v477 = vunpack.c.h.b16 %v381
    %v478 = vpack.c.b16 %v415, %v414
    %v479 = vpack.c.b16 %v417, %v416
    %v480 = vpack.c.b16 %v419, %v418
    %v481 = vpack.c.b16 %v421, %v420
    %v482 = vpack.c.b16 %v423, %v422
    %v483 = vpack.c.b16 %v425, %v424
    %v484 = vpack.c.b16 %v427, %v426
    %v485 = vpack.c.b16 %v429, %v428
    %v486 = vpack.c.b16 %v431, %v430
    %v487 = vpack.c.b16 %v433, %v432
    %v488 = vpack.c.b16 %v435, %v434
    %v489 = vpack.c.b16 %v437, %v436
    %v490 = vpack.c.b16 %v439, %v438
    %v491 = vpack.c.b16 %v441, %v440
    %v492 = vpack.c.b16 %v443, %v442
    %v493 = vpack.c.b16 %v445, %v444
    %v494 = vpack.c.b16 %v447, %v446
    %v495 = vpack.c.b16 %v449, %v448
    %v496 = vpack.c.b16 %v451, %v450
    %v497 = vpack.c.b16 %v453, %v452
    %v498 = vpack.c.b16 %v455, %v454
    %v499 = vpack.c.b16 %v457, %v456
    %v500 = vpack.c.b16 %v459, %v458
    %v501 = vpack.c.b16 %v461, %v460
    %v502 = vpack.c.b16 %v463, %v462
    %v503 = vpack.c.b16 %v465, %v464
    %v504 = vpack.c.b16 %v467, %v466
    %v505 = vpack.c.b16 %v469, %v468
    %v506 = vpack.c.b16 %v471, %v470
    %v507 = vpack.c.b16 %v473, %v472
    %v508 = vpack.c.b16 %v475, %v474
    %v509 = vpack.c.b16 %v477, %v476
    %542 = vst [vmem:[#allocation2] sm:$0xff] %v478
    %543 = vst [vmem:[#allocation2 + $0x8] sm:$0xff] %v479
    %544 = vst [vmem:[#allocation2 + $0x10] sm:$0xff] %v480
    %545 = vst [vmem:[#allocation2 + $0x18] sm:$0xff] %v481
    %546 = vst [vmem:[#allocation2 + $0x20] sm:$0xff] %v482
    %547 = vst [vmem:[#allocation2 + $0x28] sm:$0xff] %v483
    %548 = vst [vmem:[#allocation2 + $0x30] sm:$0xff] %v484
    %549 = vst [vmem:[#allocation2 + $0x38] sm:$0xff] %v485
    %550 = vst [vmem:[#allocation2 + $0x40] sm:$0xff] %v486
    %551 = vst [vmem:[#allocation2 + $0x48] sm:$0xff] %v487
    %552 = vst [vmem:[#allocation2 + $0x50] sm:$0xff] %v488
    %553 = vst [vmem:[#allocation2 + $0x58] sm:$0xff] %v489
    %554 = vst [vmem:[#allocation2 + $0x60] sm:$0xff] %v490
    %555 = vst [vmem:[#allocation2 + $0x68] sm:$0xff] %v491
    %556 = vst [vmem:[#allocation2 + $0x70] sm:$0xff] %v492
    %557 = vst [vmem:[#allocation2 + $0x78] sm:$0xff] %v493
    %558 = vst [vmem:[#allocation2 + $0x80] sm:$0xff] %v494
    %559 = vst [vmem:[#allocation2 + $0x88] sm:$0xff] %v495
    %560 = vst [vmem:[#allocation2 + $0x90] sm:$0xff] %v496
    %561 = vst [vmem:[#allocation2 + $0x98] sm:$0xff] %v497
    %562 = vst [vmem:[#allocation2 + $0xa0] sm:$0xff] %v498
    %563 = vst [vmem:[#allocation2 + $0xa8] sm:$0xff] %v499
    %564 = vst [vmem:[#allocation2 + $0xb0] sm:$0xff] %v500
    %565 = vst [vmem:[#allocation2 + $0xb8] sm:$0xff] %v501
    %566 = vst [vmem:[#allocation2 + $0xc0] sm:$0xff] %v502
    %567 = vst [vmem:[#allocation2 + $0xc8] sm:$0xff] %v503
    %568 = vst [vmem:[#allocation2 + $0xd0] sm:$0xff] %v504
    %569 = vst [vmem:[#allocation2 + $0xd8] sm:$0xff] %v505
    %570 = vst [vmem:[#allocation2 + $0xe0] sm:$0xff] %v506
    %571 = vst [vmem:[#allocation2 + $0xe8] sm:$0xff] %v507
    %572 = vst [vmem:[#allocation2 + $0xf0] sm:$0xff] %v508
    %573 = vst [vmem:[#allocation2 + $0xf8] sm:$0xff] %v509
    %v574 = vld [vmem:[%s2] sm:$0xff]
    %v575 = vld [vmem:[%s2 + $0x8] sm:$0xff]
    %v576 = vld [vmem:[%s2 + $0x10] sm:$0xff]
    %v577 = vld [vmem:[%s2 + $0x18] sm:$0xff]
    %v582 = vunpack.c.l.b16 %v574
    %v583 = vunpack.c.h.b16 %v574
    %v584 = vunpack.c.l.b16 %v575
    %v585 = vunpack.c.h.b16 %v575
    %v586 = vunpack.c.l.b16 %v576
    %v587 = vunpack.c.h.b16 %v576
    %v588 = vunpack.c.l.b16 %v577
    %v589 = vunpack.c.h.b16 %v577
    %v590 = vpack.c.b16 %v586, %v582
    %v591 = vpack.c.b16 %v587, %v583
    %v592 = vpack.c.b16 %v588, %v584
    %v593 = vpack.c.b16 %v589, %v585
    %598 = vmatprep.subr.bf16.mxu0 0
    %599 = vmatpush1.bf16.msra.mxu0 0
    %600 = vmatprep.subr.bf16.mxu0 0
    %601 = vmatpush1.bf16.msra.mxu0 0
    %602 = vmatprep.subr.bf16.mxu0 0
    %603 = vmatpush1.bf16.msra.mxu0 0
    %604 = vmatprep.subr.bf16.mxu0 0
    %605 = vmatpush1.bf16.msra.mxu0 0
    %606 = vmatprep.subr.bf16.mxu0 0
    %607 = vmatpush1.bf16.msra.mxu0 0
    %608 = vmatprep.subr.bf16.mxu0 0
    %609 = vmatpush1.bf16.msra.mxu0 0
    %610 = vmatprep.subr.bf16.mxu0 0
    %611 = vmatpush1.bf16.msra.mxu0 0
    %612 = vmatprep.subr.bf16.mxu0 %v591
    %613 = vmatpush1.bf16.msra.mxu0 %v590
    %614 = vmatprep.subr.bf16.mxu0 0
    %615 = vmatpush2.bf16.msra.mxu0 0
    %616 = vmatprep.subr.bf16.mxu0 0
    %617 = vmatpush2.bf16.msra.mxu0 0
    %618 = vmatprep.subr.bf16.mxu0 0
    %619 = vmatpush2.bf16.msra.mxu0 0
    %620 = vmatprep.subr.bf16.mxu0 0
    %621 = vmatpush2.bf16.msra.mxu0 0
    %622 = vmatprep.subr.bf16.mxu0 0
    %623 = vmatpush2.bf16.msra.mxu0 0
    %624 = vmatprep.subr.bf16.mxu0 0
    %625 = vmatpush2.bf16.msra.mxu0 0
    %626 = vmatprep.subr.bf16.mxu0 0
    %627 = vmatpush2.bf16.msra.mxu0 0
    %628 = vmatprep.subr.bf16.mxu0 0
    %629 = vmatpush2.bf16.msra.mxu0 0
    %630 = vmatprep.mubr.bf16.mxu0 0
    %631 = vmatmul.mubr.bf16.gmra.mxu0 %v101
    %v632 = vpop.f32.mrf.mxu0
    %v633 = vadd.f32 0.0, %v632
    %v634 = vpop.f32.mrf.mxu0
    %v635 = vadd.f32 0.0, %v634
    %v636 = vpop.f32.mrf.mxu0
    %v637 = vadd.f32 0.0, %v636
    %v638 = vpop.f32.mrf.mxu0
    %v639 = vadd.f32 0.0, %v638
    %640 = vmatprep.mubr.bf16.mxu0 0
    %641 = vmatmul.mubr.bf16.gmra.mxu0 %v104
    %v642 = vpop.f32.mrf.mxu0
    %v643 = vadd.f32 0.0, %v642
    %v644 = vpop.f32.mrf.mxu0
    %v645 = vadd.f32 0.0, %v644
    %v646 = vpop.f32.mrf.mxu0
    %v647 = vadd.f32 0.0, %v646
    %v648 = vpop.f32.mrf.mxu0
    %v649 = vadd.f32 0.0, %v648
    %650 = vmatprep.mubr.bf16.mxu0 0
    %651 = vmatmul.mubr.bf16.gmra.mxu0 %v107
    %v652 = vpop.f32.mrf.mxu0
    %v653 = vadd.f32 0.0, %v652
    %v654 = vpop.f32.mrf.mxu0
    %v655 = vadd.f32 0.0, %v654
    %v656 = vpop.f32.mrf.mxu0
    %v657 = vadd.f32 0.0, %v656
    %v658 = vpop.f32.mrf.mxu0
    %v659 = vadd.f32 0.0, %v658
    %660 = vmatprep.mubr.bf16.mxu0 0
    %661 = vmatmul.mubr.bf16.gmra.mxu0 %v110
    %v662 = vpop.f32.mrf.mxu0
    %v663 = vadd.f32 0.0, %v662
    %v664 = vpop.f32.mrf.mxu0
    %v665 = vadd.f32 0.0, %v664
    %v666 = vpop.f32.mrf.mxu0
    %v667 = vadd.f32 0.0, %v666
    %v668 = vpop.f32.mrf.mxu0
    %v669 = vadd.f32 0.0, %v668
    %670 = vmatprep.mubr.bf16.mxu0 0
    %671 = vmatmul.mubr.bf16.gmra.mxu0 %v113
    %v672 = vpop.f32.mrf.mxu0
    %v673 = vadd.f32 0.0, %v672
    %v674 = vpop.f32.mrf.mxu0
    %v675 = vadd.f32 0.0, %v674
    %v676 = vpop.f32.mrf.mxu0
    %v677 = vadd.f32 0.0, %v676
    %v678 = vpop.f32.mrf.mxu0
    %v679 = vadd.f32 0.0, %v678
    %680 = vmatprep.mubr.bf16.mxu0 0
    %681 = vmatmul.mubr.bf16.gmra.mxu0 %v116
    %v682 = vpop.f32.mrf.mxu0
    %v683 = vadd.f32 0.0, %v682
    %v684 = vpop.f32.mrf.mxu0
    %v685 = vadd.f32 0.0, %v684
    %v686 = vpop.f32.mrf.mxu0
    %v687 = vadd.f32 0.0, %v686
    %v688 = vpop.f32.mrf.mxu0
    %v689 = vadd.f32 0.0, %v688
    %690 = vmatprep.mubr.bf16.mxu0 0
    %691 = vmatmul.mubr.bf16.gmra.mxu0 %v119
    %v692 = vpop.f32.mrf.mxu0
    %v693 = vadd.f32 0.0, %v692
    %v694 = vpop.f32.mrf.mxu0
    %v695 = vadd.f32 0.0, %v694
    %v696 = vpop.f32.mrf.mxu0
    %v697 = vadd.f32 0.0, %v696
    %v698 = vpop.f32.mrf.mxu0
    %v699 = vadd.f32 0.0, %v698
    %700 = vmatprep.mubr.bf16.mxu0 0
    %701 = vmatmul.mubr.bf16.gmra.mxu0 %v122
    %v702 = vpop.f32.mrf.mxu0
    %v703 = vadd.f32 0.0, %v702
    %v704 = vpop.f32.mrf.mxu0
    %v705 = vadd.f32 0.0, %v704
    %v706 = vpop.f32.mrf.mxu0
    %v707 = vadd.f32 0.0, %v706
    %v708 = vpop.f32.mrf.mxu0
    %v709 = vadd.f32 0.0, %v708
    %710 = vdwg.mxu0
    %711 = vmatprep.subr.bf16.mxu0 0
    %712 = vmatpush1.bf16.msra.mxu0 0
    %713 = vmatprep.subr.bf16.mxu0 0
    %714 = vmatpush1.bf16.msra.mxu0 0
    %715 = vmatprep.subr.bf16.mxu0 0
    %716 = vmatpush1.bf16.msra.mxu0 0
    %717 = vmatprep.subr.bf16.mxu0 0
    %718 = vmatpush1.bf16.msra.mxu0 0
    %719 = vmatprep.subr.bf16.mxu0 0
    %720 = vmatpush1.bf16.msra.mxu0 0
    %721 = vmatprep.subr.bf16.mxu0 0
    %722 = vmatpush1.bf16.msra.mxu0 0
    %723 = vmatprep.subr.bf16.mxu0 0
    %724 = vmatpush1.bf16.msra.mxu0 0
    %725 = vmatprep.subr.bf16.mxu0 %v593
    %726 = vmatpush1.bf16.msra.mxu0 %v592
    %727 = vmatprep.subr.bf16.mxu0 0
    %728 = vmatpush2.bf16.msra.mxu0 0
    %729 = vmatprep.subr.bf16.mxu0 0
    %730 = vmatpush2.bf16.msra.mxu0 0
    %731 = vmatprep.subr.bf16.mxu0 0
    %732 = vmatpush2.bf16.msra.mxu0 0
    %733 = vmatprep.subr.bf16.mxu0 0
    %734 = vmatpush2.bf16.msra.mxu0 0
    %735 = vmatprep.subr.bf16.mxu0 0
    %736 = vmatpush2.bf16.msra.mxu0 0
    %737 = vmatprep.subr.bf16.mxu0 0
    %738 = vmatpush2.bf16.msra.mxu0 0
    %739 = vmatprep.subr.bf16.mxu0 0
    %740 = vmatpush2.bf16.msra.mxu0 0
    %741 = vmatprep.subr.bf16.mxu0 0
    %742 = vmatpush2.bf16.msra.mxu0 0
    %743 = vmatprep.mubr.bf16.mxu0 0
    %744 = vmatmul.mubr.bf16.gmra.mxu0 %v101
    %v745 = vpop.f32.mrf.mxu0
    %v746 = vadd.f32 0.0, %v745
    %v747 = vpop.f32.mrf.mxu0
    %v748 = vadd.f32 0.0, %v747
    %v749 = vpop.f32.mrf.mxu0
    %v750 = vadd.f32 0.0, %v749
    %v751 = vpop.f32.mrf.mxu0
    %v752 = vadd.f32 0.0, %v751
    %753 = vmatprep.mubr.bf16.mxu0 0
    %754 = vmatmul.mubr.bf16.gmra.mxu0 %v104
    %v755 = vpop.f32.mrf.mxu0
    %v756 = vadd.f32 0.0, %v755
    %v757 = vpop.f32.mrf.mxu0
    %v758 = vadd.f32 0.0, %v757
    %v759 = vpop.f32.mrf.mxu0
    %v760 = vadd.f32 0.0, %v759
    %v761 = vpop.f32.mrf.mxu0
    %v762 = vadd.f32 0.0, %v761
    %763 = vmatprep.mubr.bf16.mxu0 0
    %764 = vmatmul.mubr.bf16.gmra.mxu0 %v107
    %v765 = vpop.f32.mrf.mxu0
    %v766 = vadd.f32 0.0, %v765
    %v767 = vpop.f32.mrf.mxu0
    %v768 = vadd.f32 0.0, %v767
    %v769 = vpop.f32.mrf.mxu0
    %v770 = vadd.f32 0.0, %v769
    %v771 = vpop.f32.mrf.mxu0
    %v772 = vadd.f32 0.0, %v771
    %773 = vmatprep.mubr.bf16.mxu0 0
    %774 = vmatmul.mubr.bf16.gmra.mxu0 %v110
    %v775 = vpop.f32.mrf.mxu0
    %v776 = vadd.f32 0.0, %v775
    %v777 = vpop.f32.mrf.mxu0
    %v778 = vadd.f32 0.0, %v777
    %v779 = vpop.f32.mrf.mxu0
    %v780 = vadd.f32 0.0, %v779
    %v781 = vpop.f32.mrf.mxu0
    %v782 = vadd.f32 0.0, %v781
    %783 = vmatprep.mubr.bf16.mxu0 0
    %784 = vmatmul.mubr.bf16.gmra.mxu0 %v113
    %v785 = vpop.f32.mrf.mxu0
    %v786 = vadd.f32 0.0, %v785
    %v787 = vpop.f32.mrf.mxu0
    %v788 = vadd.f32 0.0, %v787
    %v789 = vpop.f32.mrf.mxu0
    %v790 = vadd.f32 0.0, %v789
    %v791 = vpop.f32.mrf.mxu0
    %v792 = vadd.f32 0.0, %v791
    %793 = vmatprep.mubr.bf16.mxu0 0
    %794 = vmatmul.mubr.bf16.gmra.mxu0 %v116
    %v795 = vpop.f32.mrf.mxu0
    %v796 = vadd.f32 0.0, %v795
    %v797 = vpop.f32.mrf.mxu0
    %v798 = vadd.f32 0.0, %v797
    %v799 = vpop.f32.mrf.mxu0
    %v800 = vadd.f32 0.0, %v799
    %v801 = vpop.f32.mrf.mxu0
    %v802 = vadd.f32 0.0, %v801
    %803 = vmatprep.mubr.bf16.mxu0 0
    %804 = vmatmul.mubr.bf16.gmra.mxu0 %v119
    %v805 = vpop.f32.mrf.mxu0
    %v806 = vadd.f32 0.0, %v805
    %v807 = vpop.f32.mrf.mxu0
    %v808 = vadd.f32 0.0, %v807
    %v809 = vpop.f32.mrf.mxu0
    %v810 = vadd.f32 0.0, %v809
    %v811 = vpop.f32.mrf.mxu0
    %v812 = vadd.f32 0.0, %v811
    %813 = vmatprep.mubr.bf16.mxu0 0
    %814 = vmatmul.mubr.bf16.gmra.mxu0 %v122
    %v815 = vpop.f32.mrf.mxu0
    %v816 = vadd.f32 0.0, %v815
    %v817 = vpop.f32.mrf.mxu0
    %v818 = vadd.f32 0.0, %v817
    %v819 = vpop.f32.mrf.mxu0
    %v820 = vadd.f32 0.0, %v819
    %v821 = vpop.f32.mrf.mxu0
    %v822 = vadd.f32 0.0, %v821
    %823 = vdwg.mxu0
    %v824 = vpack.c.bf16 %v637, %v633
    %v825 = vpack.c.bf16 %v639, %v635
    %v826 = vpack.c.bf16 %v750, %v746
    %v827 = vpack.c.bf16 %v752, %v748
    %v828 = vpack.c.bf16 %v647, %v643
    %v829 = vpack.c.bf16 %v649, %v645
    %v830 = vpack.c.bf16 %v760, %v756
    %v831 = vpack.c.bf16 %v762, %v758
    %v832 = vpack.c.bf16 %v657, %v653
    %v833 = vpack.c.bf16 %v659, %v655
    %v834 = vpack.c.bf16 %v770, %v766
    %v835 = vpack.c.bf16 %v772, %v768
    %v836 = vpack.c.bf16 %v667, %v663
    %v837 = vpack.c.bf16 %v669, %v665
    %v838 = vpack.c.bf16 %v780, %v776
    %v839 = vpack.c.bf16 %v782, %v778
    %v840 = vpack.c.bf16 %v677, %v673
    %v841 = vpack.c.bf16 %v679, %v675
    %v842 = vpack.c.bf16 %v790, %v786
    %v843 = vpack.c.bf16 %v792, %v788
    %v844 = vpack.c.bf16 %v687, %v683
    %v845 = vpack.c.bf16 %v689, %v685
    %v846 = vpack.c.bf16 %v800, %v796
    %v847 = vpack.c.bf16 %v802, %v798
    %v848 = vpack.c.bf16 %v697, %v693
    %v849 = vpack.c.bf16 %v699, %v695
    %v850 = vpack.c.bf16 %v810, %v806
    %v851 = vpack.c.bf16 %v812, %v808
    %v852 = vpack.c.bf16 %v707, %v703
    %v853 = vpack.c.bf16 %v709, %v705
    %v854 = vpack.c.bf16 %v820, %v816
    %v855 = vpack.c.bf16 %v822, %v818
    %v888 = vunpack.c.l.b16 %v824
    %v889 = vunpack.c.l.b16 %v825
    %v890 = vunpack.c.l.b16 %v826
    %v891 = vunpack.c.l.b16 %v827
    %v892 = vunpack.c.h.b16 %v824
    %v893 = vunpack.c.h.b16 %v825
    %v894 = vunpack.c.h.b16 %v826
    %v895 = vunpack.c.h.b16 %v827
    %v896 = vunpack.c.l.b16 %v828
    %v897 = vunpack.c.l.b16 %v829
    %v898 = vunpack.c.l.b16 %v830
    %v899 = vunpack.c.l.b16 %v831
    %v900 = vunpack.c.h.b16 %v828
    %v901 = vunpack.c.h.b16 %v829
    %v902 = vunpack.c.h.b16 %v830
    %v903 = vunpack.c.h.b16 %v831
    %v904 = vunpack.c.l.b16 %v832
    %v905 = vunpack.c.l.b16 %v833
    %v906 = vunpack.c.l.b16 %v834
    %v907 = vunpack.c.l.b16 %v835
    %v908 = vunpack.c.h.b16 %v832
    %v909 = vunpack.c.h.b16 %v833
    %v910 = vunpack.c.h.b16 %v834
    %v911 = vunpack.c.h.b16 %v835
    %v912 = vunpack.c.l.b16 %v836
    %v913 = vunpack.c.l.b16 %v837
    %v914 = vunpack.c.l.b16 %v838
    %v915 = vunpack.c.l.b16 %v839
    %v916 = vunpack.c.h.b16 %v836
    %v917 = vunpack.c.h.b16 %v837
    %v918 = vunpack.c.h.b16 %v838
    %v919 = vunpack.c.h.b16 %v839
    %v920 = vunpack.c.l.b16 %v840
    %v921 = vunpack.c.l.b16 %v841
    %v922 = vunpack.c.l.b16 %v842
    %v923 = vunpack.c.l.b16 %v843
    %v924 = vunpack.c.h.b16 %v840
    %v925 = vunpack.c.h.b16 %v841
    %v926 = vunpack.c.h.b16 %v842
    %v927 = vunpack.c.h.b16 %v843
    %v928 = vunpack.c.l.b16 %v844
    %v929 = vunpack.c.l.b16 %v845
    %v930 = vunpack.c.l.b16 %v846
    %v931 = vunpack.c.l.b16 %v847
    %v932 = vunpack.c.h.b16 %v844
    %v933 = vunpack.c.h.b16 %v845
    %v934 = vunpack.c.h.b16 %v846
    %v935 = vunpack.c.h.b16 %v847
    %v936 = vunpack.c.l.b16 %v848
    %v937 = vunpack.c.l.b16 %v849
    %v938 = vunpack.c.l.b16 %v850
    %v939 = vunpack.c.l.b16 %v851
    %v940 = vunpack.c.h.b16 %v848
    %v941 = vunpack.c.h.b16 %v849
    %v942 = vunpack.c.h.b16 %v850
    %v943 = vunpack.c.h.b16 %v851
    %v944 = vunpack.c.l.b16 %v852
    %v945 = vunpack.c.l.b16 %v853
    %v946 = vunpack.c.l.b16 %v854
    %v947 = vunpack.c.l.b16 %v855
    %v948 = vunpack.c.h.b16 %v852
    %v949 = vunpack.c.h.b16 %v853
    %v950 = vunpack.c.h.b16 %v854
    %v951 = vunpack.c.h.b16 %v855
    %v952 = vpack.c.b16 %v889, %v888
    %v953 = vpack.c.b16 %v891, %v890
    %v954 = vpack.c.b16 %v893, %v892
    %v955 = vpack.c.b16 %v895, %v894
    %v956 = vpack.c.b16 %v897, %v896
    %v957 = vpack.c.b16 %v899, %v898
    %v958 = vpack.c.b16 %v901, %v900
    %v959 = vpack.c.b16 %v903, %v902
    %v960 = vpack.c.b16 %v905, %v904
    %v961 = vpack.c.b16 %v907, %v906
    %v962 = vpack.c.b16 %v909, %v908
    %v963 = vpack.c.b16 %v911, %v910
    %v964 = vpack.c.b16 %v913, %v912
    %v965 = vpack.c.b16 %v915, %v914
    %v966 = vpack.c.b16 %v917, %v916
    %v967 = vpack.c.b16 %v919, %v918
    %v968 = vpack.c.b16 %v921, %v920
    %v969 = vpack.c.b16 %v923, %v922
    %v970 = vpack.c.b16 %v925, %v924
    %v971 = vpack.c.b16 %v927, %v926
    %v972 = vpack.c.b16 %v929, %v928
    %v973 = vpack.c.b16 %v931, %v930
    %v974 = vpack.c.b16 %v933, %v932
    %v975 = vpack.c.b16 %v935, %v934
    %v976 = vpack.c.b16 %v937, %v936
    %v977 = vpack.c.b16 %v939, %v938
    %v978 = vpack.c.b16 %v941, %v940
    %v979 = vpack.c.b16 %v943, %v942
    %v980 = vpack.c.b16 %v945, %v944
    %v981 = vpack.c.b16 %v947, %v946
    %v982 = vpack.c.b16 %v949, %v948
    %v983 = vpack.c.b16 %v951, %v950
    %1016 = vst [vmem:[#allocation4] sm:$0xff] %v952
    %1017 = vst [vmem:[#allocation4 + $0x8] sm:$0xff] %v953
    %1018 = vst [vmem:[#allocation4 + $0x10] sm:$0xff] %v954
    %1019 = vst [vmem:[#allocation4 + $0x18] sm:$0xff] %v955
    %1020 = vst [vmem:[#allocation4 + $0x20] sm:$0xff] %v956
    %1021 = vst [vmem:[#allocation4 + $0x28] sm:$0xff] %v957
    %1022 = vst [vmem:[#allocation4 + $0x30] sm:$0xff] %v958
    %1023 = vst [vmem:[#allocation4 + $0x38] sm:$0xff] %v959
    %1024 = vst [vmem:[#allocation4 + $0x40] sm:$0xff] %v960
    %1025 = vst [vmem:[#allocation4 + $0x48] sm:$0xff] %v961
    %1026 = vst [vmem:[#allocation4 + $0x50] sm:$0xff] %v962
    %1027 = vst [vmem:[#allocation4 + $0x58] sm:$0xff] %v963
    %1028 = vst [vmem:[#allocation4 + $0x60] sm:$0xff] %v964
    %1029 = vst [vmem:[#allocation4 + $0x68] sm:$0xff] %v965
    %1030 = vst [vmem:[#allocation4 + $0x70] sm:$0xff] %v966
    %1031 = vst [vmem:[#allocation4 + $0x78] sm:$0xff] %v967
    %1032 = vst [vmem:[#allocation4 + $0x80] sm:$0xff] %v968
    %1033 = vst [vmem:[#allocation4 + $0x88] sm:$0xff] %v969
    %1034 = vst [vmem:[#allocation4 + $0x90] sm:$0xff] %v970
    %1035 = vst [vmem:[#allocation4 + $0x98] sm:$0xff] %v971
    %1036 = vst [vmem:[#allocation4 + $0xa0] sm:$0xff] %v972
    %1037 = vst [vmem:[#allocation4 + $0xa8] sm:$0xff] %v973
    %1038 = vst [vmem:[#allocation4 + $0xb0] sm:$0xff] %v974
    %1039 = vst [vmem:[#allocation4 + $0xb8] sm:$0xff] %v975
    %1040 = vst [vmem:[#allocation4 + $0xc0] sm:$0xff] %v976
    %1041 = vst [vmem:[#allocation4 + $0xc8] sm:$0xff] %v977
    %1042 = vst [vmem:[#allocation4 + $0xd0] sm:$0xff] %v978
    %1043 = vst [vmem:[#allocation4 + $0xd8] sm:$0xff] %v979
    %1044 = vst [vmem:[#allocation4 + $0xe0] sm:$0xff] %v980
    %1045 = vst [vmem:[#allocation4 + $0xe8] sm:$0xff] %v981
    %1046 = vst [vmem:[#allocation4 + $0xf0] sm:$0xff] %v982
    %1047 = vst [vmem:[#allocation4 + $0xf8] sm:$0xff] %v983
    // Predicated region
    $region14: #{tpu_custom_call.1} parent=1 // pred_check
      _
    $region15: #{tpu_custom_call.1} parent=1 // pred_check_branch
      %1049 = sbr.rel (0) target = $region17
    $region16: #{tpu_custom_call.1} parent=1 // pred_region
      %s1051 = ssub.s32 4096, 4096
      %1052 = vsyncadd [#allocation3], %s1051
      %s1053 = sshll.u32 [#allocation2], 4
      %s1054 = int_to_ptr.vmem [resolvable:$true] %s1053
      %1059 = dma.vmem_to_hbm [thread:$0]  %s1054, 4096, %s3, [#allocation3], 256, 256, 16
    $region17: #{tpu_custom_call.1} parent=1 // pred_fallthru
      _
    // Predicated region
    $region18: #{tpu_custom_call.1} parent=1 // pred_check
      _
    $region19: #{tpu_custom_call.1} parent=1 // pred_check_branch
      %1061 = sbr.rel (0) target = $region21
    $region20: #{tpu_custom_call.1} parent=1 // pred_region
      %s1063 = ssub.s32 4096, 4096
      %1064 = vsyncadd [#allocation5], %s1063
      %s1065 = sshll.u32 [#allocation4], 4
      %s1066 = int_to_ptr.vmem [resolvable:$true] %s1065
      %1071 = dma.vmem_to_hbm [thread:$0]  %s1066, 4096, %s4, [#allocation5], 256, 256, 16
    $region21: #{tpu_custom_call.1} parent=1 // pred_fallthru
      _
    // Predicated region
    $region22: #{tpu_custom_call.1} parent=1 // pred_check
      _
    $region23: #{tpu_custom_call.1} parent=1 // pred_check_branch
      %1073 = sbr.rel (0) target = $region25
    $region24: #{tpu_custom_call.1} parent=1 // pred_region
      %1074 = dma.done [#allocation3], 4096
    $region25: #{tpu_custom_call.1} parent=1 // pred_fallthru
      _
    // Predicated region
    $region26: #{tpu_custom_call.1} parent=1 // pred_check
      _
    $region27: #{tpu_custom_call.1} parent=1 // pred_check_branch
      %1076 = sbr.rel (0) target = $region29
    $region28: #{tpu_custom_call.1} parent=1 // pred_region
      %1077 = dma.done [#allocation5], 4096
    $region29: #{tpu_custom_call.1} parent=1 // pred_fallthru
      _
    %1078 = vsyncpa [#allocation3], 1
    %1079 = vsyncpa [#allocation5], 1

</llo_original>
